<compile_context>
chip_gen: v7x
topology: tpu7x:2x2x1
jax: 0.10.0
libtpu: 0.0.40
codegen_flags: <defaults>
</compile_context>

<pallas_src>
import functools

import jax
import jax.numpy as jnp
from jax.experimental import pallas as pl
from jax.experimental.pallas import tpu as pltpu


# --------------------------------------------------------------------------------------
# Kernel
# --------------------------------------------------------------------------------------
def _ppnet_loss_kernel(batch, tiles_per_core, needs_mask,
                       cpl_ref, ct_ref, md_ref, tpl_ref, lbl_ref,
                       bce_out_ref, clust_out_ref, sep_out_ref, tgt_out_ref,
                       bce_acc, clust_acc, sep_acc, tgt_acc):
    core = pl.program_id(0)                 # "parallel" axis (TensorCore on v7x)
    step = pl.program_id(1)                 # "arbitrary" axis (batch-tile reduction)
    tile_b, C = cpl_ref.shape

    # ---- first tile of this core: zero the deferred accumulators -----------------------
    @pl.when(step == 0)
    def _init():
        bce_acc[...] = jnp.zeros_like(bce_acc)
        clust_acc[...] = jnp.zeros_like(clust_acc)
        sep_acc[...] = jnp.zeros_like(sep_acc)
        tgt_acc[...] = jnp.zeros_like(tgt_acc)

    # ---- validity mask for the ragged last tile (statically elided when aligned) -------
    if needs_mask:
        row0 = (core * tiles_per_core + step) * tile_b
        rows = jax.lax.broadcasted_iota(jnp.int32, (tile_b, 1), 0) + row0
        valid = rows < batch                                        # (tile_b, 1) bool
    else:
        valid = None

    x = cpl_ref[...].astype(jnp.float32)                            # (tile_b, C)
    y = ct_ref[...].astype(jnp.float32)                             # (tile_b, C)

    # ---- concept BCE-with-logits (stable form; 1 exp + 1 log per element on the EUP) ----
    bce = jnp.maximum(x, 0.0) - x * y + jnp.log(1.0 + jnp.exp(-jnp.abs(x)))
    if needs_mask:
        bce = jnp.where(valid, bce, 0.0)                            # select: kills NaN/Inf tails
    bce_acc[...] += bce                                             # deferred reduction

    # ---- cluster / separation cost: min over prototypes of each concept group ----------
    md = md_ref[...].astype(jnp.float32)                            # (tile_b, 2C, P)
    mins = jnp.min(md, axis=2)                                      # (tile_b, 2C)
    is_true = y > 0.5
    clust = jnp.where(is_true, mins[:, :C], mins[:, C:])            # chosen group
    sep = jnp.where(is_true, mins[:, C:], mins[:, :C])              # flipped group
    if needs_mask:
        clust = jnp.where(valid, clust, 0.0)
        sep = jnp.where(valid, sep, 0.0)
    clust_acc[...] += clust
    sep_acc[...] += sep

    # ---- multiclass target cross-entropy (one-hot rebuilt from int32 labels) ------------
    logits = tpl_ref[...].astype(jnp.float32)                       # (tile_b, K)
    labels = lbl_ref[...]                                           # (tile_b, 1) int32
    mrow = jnp.max(logits, axis=1, keepdims=True)
    lse = jnp.log(jnp.sum(jnp.exp(logits - mrow), axis=1, keepdims=True)) + mrow
    cls = jax.lax.broadcasted_iota(jnp.int32, logits.shape, 1)
    tgt = jnp.sum(jnp.where(cls == labels, logits, 0.0), axis=1, keepdims=True)
    nll = lse - tgt
    if needs_mask:
        nll = jnp.where(valid, nll, 0.0)
    tgt_acc[...] += nll

    # ---- last tile of this core: one cross-lane/sublane reduce per quantity -------------
    @pl.when(step == pl.num_programs(1) - 1)
    def _finalize():
        bce_out_ref[...] = jnp.sum(bce_acc[...], axis=0, keepdims=True)     # (1, C)
        clust_out_ref[...] = jnp.sum(clust_acc[...], keepdims=True)          # (1, 1)
        sep_out_ref[...] = jnp.sum(sep_acc[...], keepdims=True)              # (1, 1)
        tgt_out_ref[...] = jnp.sum(tgt_acc[...], keepdims=True)              # (1, 1)


# --------------------------------------------------------------------------------------
# Sizing helpers (generation aware)
# --------------------------------------------------------------------------------------
def _round_up(x, m):
    return -(-int(x) // m) * m


def _vmem_plan():
    """(tile budget bytes, vmem_limit_bytes) chosen from the chip's VMEM capacity."""
    try:
        cap = int(pltpu.get_tpu_info().vmem_capacity_bytes)
    except Exception:
        cap = 64 * 1024 * 1024                      # conservative (v7x-sized) fallback
    if cap >= 100 * 1024 * 1024:                    # v5e / v6e: 128 MiB physical per core
        return 64 * 1024 * 1024, 96 * 1024 * 1024
    return 26 * 1024 * 1024, 48 * 1024 * 1024       # v7x: 64 MiB per TensorCore


def _pick_batch_tile(B, C, P, K, dtypes, budget_bytes, max_tile):
    """Largest multiple-of-8 batch tile whose double-buffered input tiles (with VMEM lane/
    sublane padding) plus single-buffered scratch stay under the budget."""
    isz = {k: jnp.dtype(d).itemsize for k, d in dtypes.items()}
    lane = 128
    in_row = (_round_up(C, lane) * isz['cpl'] +
              _round_up(C, lane) * isz['ct'] +
              _round_up(2 * C, 8) * _round_up(P, lane) * isz['md'] +
              _round_up(K, lane) * isz['tpl'] +
              lane * 4)                                            # int32 labels
    scratch_row = 4 * (3 * _round_up(C, lane) + lane)              # bce/clust/sep + tgt acc
    per_row = 2 * in_row + scratch_row                             # 2x: BlockSpec double-buffer
    tile = max(8, min(int(max_tile), budget_bytes // per_row))
    tile = max(8, (tile // 8) * 8)
    return min(tile, _round_up(B, 8))


# --------------------------------------------------------------------------------------
# Wrapper (same 10-tuple as PPNetLoss.forward; concepts_loss returned as one (C,) array)
# --------------------------------------------------------------------------------------
def ppnet_loss(concepts_pred_logits, concepts_true, min_distances, proto_presence,
               target_pred_logits, target_true, *,
               num_classes, num_prototypes_per_class,
               last_layer_weight, l1_mask=None,
               coefs=None, training_mode='joint', alpha=1.0, use_l1_mask=True,
               max_batch_tile=1024, num_cores=2):
    # TODO(synk): the num_classes == 2 branch of the PyTorch forward is broken upstream
    # (nn.Sigmoid(tensor) misuse, total_loss undefined); only the multiclass path exists.
    # TODO(synk): only reduction='mean' is implemented (the PyTorch default).
    del proto_presence                          # unused by the PyTorch forward as well
    B, C = concepts_pred_logits.shape
    K = int(num_classes)
    P = int(num_prototypes_per_class)
    alpha = float(alpha) if training_mode == 'joint' else 1.0
    if coefs is None:
        coefs = {'crs_ent': 1.0, 'clst': 0.8, 'sep': -0.08, 'l1': 1e-4}
    coefs = {k: float(v) for k, v in coefs.items()}

    # Free, contiguous reshape (no transpose, no extra HBM pass over the largest input).
    # TODO(synk): for P << 128 the (tile_b, 2C, P) VMEM tile is lane-padded to 128; a
    # minor-dim strided group-min over the native (B, 2C*P) layout would cut that padding.
    md = min_distances.reshape(B, 2 * C, P)
    labels = target_true.astype(jnp.int32).reshape(B, 1)

    budget, vmem_limit = _vmem_plan()
    tile_b = _pick_batch_tile(
        B, C, P, K,
        dict(cpl=concepts_pred_logits.dtype, ct=concepts_true.dtype,
             md=md.dtype, tpl=target_pred_logits.dtype),
        budget, max_batch_tile)
    n_tiles = -(-B // tile_b)
    num_cores = max(1, int(num_cores))
    tpc = -(-n_tiles // num_cores)                      # tiles per core
    needs_mask = (num_cores * tpc * tile_b != B)

    def bidx(c, i):
        # clamp so logically-empty trailing tiles never index past the last block
        return jnp.minimum(c * tpc + i, n_tiles - 1)

    kernel = functools.partial(_ppnet_loss_kernel, B, tpc, needs_mask)

    # TODO(synk): the four lane-narrow batch inputs (C+C+K+1 lanes) could be concatenated
    # into one lane-packed array to merge four narrow DMAs per step into a single one.
    in_specs = [
        pl.BlockSpec((tile_b, C), lambda c, i: (bidx(c, i), 0)),            # concept logits
        pl.BlockSpec((tile_b, C), lambda c, i: (bidx(c, i), 0)),            # concept labels
        pl.BlockSpec((tile_b, 2 * C, P), lambda c, i: (bidx(c, i), 0, 0)),  # min distances
        pl.BlockSpec((tile_b, K), lambda c, i: (bidx(c, i), 0)),            # target logits
        pl.BlockSpec((tile_b, 1), lambda c, i: (bidx(c, i), 0)),            # int32 labels
    ]
    out_specs = (
        pl.BlockSpec((None, 1, C), lambda c, i: (c, 0, 0)),   # per-core per-concept BCE sums
        pl.BlockSpec((None, 1, 1), lambda c, i: (c, 0, 0)),   # per-core cluster sum
        pl.BlockSpec((None, 1, 1), lambda c, i: (c, 0, 0)),   # per-core separation sum
        pl.BlockSpec((None, 1, 1), lambda c, i: (c, 0, 0)),   # per-core target CE sum
    )
    out_shape = (
        jax.ShapeDtypeStruct((num_cores, 1, C), jnp.float32),
        jax.ShapeDtypeStruct((num_cores, 1, 1), jnp.float32),
        jax.ShapeDtypeStruct((num_cores, 1, 1), jnp.float32),
        jax.ShapeDtypeStruct((num_cores, 1, 1), jnp.float32),
    )
    scratch_shapes = [pltpu.VMEM((tile_b, C), jnp.float32)] * 3 \
                   + [pltpu.VMEM((tile_b, 1), jnp.float32)]

    bytes_accessed = int(sum(a.size * a.dtype.itemsize for a in
                             (concepts_pred_logits, concepts_true, md,
                              target_pred_logits, labels)))
    cost = pl.CostEstimate(
        flops=int(B * (10 * C + 2 * C * P + 8 * K)),
        transcendentals=int(2 * B * C + B * (K + 1)),
        bytes_accessed=bytes_accessed)

    bce_p, cl_p, se_p, tg_p = pl.pallas_call(
        kernel,
        out_shape=out_shape,
        grid=(num_cores, tpc),
        in_specs=in_specs,
        out_specs=out_specs,
        scratch_shapes=scratch_shapes,
        compiler_params=pltpu.CompilerParams(
            dimension_semantics=("parallel", "arbitrary"),
            vmem_limit_bytes=vmem_limit),
        cost_estimate=cost,
    )(concepts_pred_logits, concepts_true, md, target_pred_logits, labels)

    # ---- tiny scalar epilogue in plain XLA (L1, means, weighted combinations) ----------
    concept_sums = jnp.sum(bce_p, axis=(0, 1))                      # (C,)
    concepts_loss = concept_sums / B                                # per-concept BCE means
    cross_entropy = jnp.sum(concept_sums) / (B * C)
    cluster_cost = jnp.sum(cl_p) / (B * C)
    separation_cost = jnp.sum(se_p) / (B * C)
    target_loss = jnp.sum(tg_p) / B
    w = last_layer_weight
    if use_l1_mask and l1_mask is not None:
        l1 = jnp.sum(jnp.abs(w * l1_mask))
    else:
        l1 = jnp.sum(jnp.abs(w))
    summed = (coefs['crs_ent'] * cross_entropy + coefs['clst'] * cluster_cost
              + coefs['sep'] * separation_cost + coefs['l1'] * l1)
    total = target_loss + alpha * summed
    return (target_loss, concepts_loss, summed, total,
            cross_entropy, cluster_cost, separation_cost, l1, None, None)


# --------------------------------------------------------------------------------------
# Pure-JAX reference (multiclass branch of the PyTorch forward)
# --------------------------------------------------------------------------------------
def _reference(cpl, ct, md, tpl, tt, w, mask, coefs, alpha, C, P):
    bce = jnp.maximum(cpl, 0.0) - cpl * ct + jnp.log1p(jnp.exp(-jnp.abs(cpl)))
    concepts_loss = jnp.mean(bce, axis=0)
    cross_entropy = jnp.mean(bce)
    mins = jnp.min(md.reshape(md.shape[0], 2 * C, P), axis=2)
    cluster_cost = jnp.mean(jnp.where(ct > 0.5, mins[:, :C], mins[:, C:]))
    separation_cost = jnp.mean(jnp.where(ct > 0.5, mins[:, C:], mins[:, :C]))
    l1 = jnp.sum(jnp.abs(w * mask))
    logz = jax.nn.logsumexp(tpl, axis=1)
    target_loss = jnp.mean(logz - tpl[jnp.arange(tpl.shape[0]), tt])
    summed = (coefs['crs_ent'] * cross_entropy + coefs['clst'] * cluster_cost
              + coefs['sep'] * separation_cost + coefs['l1'] * l1)
    total = target_loss + alpha * summed
    return (target_loss, concepts_loss, summed, total,
            cross_entropy, cluster_cost, separation_cost, l1)


if __name__ == "__main__":
    # Small shapes; max_batch_tile=8 forces a multi-tile grid (4 tiles, 2 per core) and a
    # ragged last tile (B=28) so the masked path and the 2-core partial sums are exercised.
    B, C, P, K = 28, 4, 8, 5
    NP = 2 * C * P
    coefs = {'crs_ent': 1.0, 'clst': 0.8, 'sep': -0.08, 'l1': 1e-4}
    alpha = 0.5

    key = jax.random.PRNGKey(0)
    k1, k2, k3, k4, k5, k6, k7, k8 = jax.random.split(key, 8)
    concepts_pred_logits = jax.random.normal(k1, (B, C), jnp.float32)
    concepts_true = jax.random.bernoulli(k2, 0.5, (B, C)).astype(jnp.float32)
    min_distances = jnp.abs(jax.random.normal(k3, (B, NP), jnp.float32)) * 3.0
    proto_presence = jax.random.normal(k4, (NP, C), jnp.float32)   # unused (as in PyTorch)
    target_pred_logits = jax.random.normal(k5, (B, K), jnp.float32)
    target_true = jax.random.randint(k6, (B,), 0, K, jnp.int32)
    last_layer_weight = jax.random.normal(k7, (2 * C, NP), jnp.float32) * 0.1
    l1_mask = jax.random.bernoulli(k8, 0.7, (2 * C, NP)).astype(jnp.float32)

    out = ppnet_loss(concepts_pred_logits, concepts_true, min_distances, proto_presence,
                     target_pred_logits, target_true,
                     num_classes=K, num_prototypes_per_class=P,
                     last_layer_weight=last_layer_weight, l1_mask=l1_mask,
                     coefs=coefs, training_mode='joint', alpha=alpha, use_l1_mask=True,
                     max_batch_tile=8, num_cores=2)
    jax.block_until_ready(out[:8])

    ref = _reference(concepts_pred_logits, concepts_true, min_distances,
                     target_pred_logits, target_true, last_layer_weight, l1_mask,
                     coefs, alpha, C, P)
    got = (out[0], out[1], out[2], out[3], out[4], out[5], out[6], out[7])
    for g, r in zip(got, ref):
        assert jnp.allclose(g, r, rtol=1e-4, atol=1e-4), (g, r)

    print("KERNEL_OK")
</pallas_src>

<mosaic_0001>
module attributes {stable_mosaic.version = 11 : i64} {
  func.func @_ppnet_loss_kernel(%arg0: i32, %arg1: i32, %arg2: memref<8x4xf32, #tpu.memory_space<vmem>>, %arg3: memref<8x4xf32, #tpu.memory_space<vmem>>, %arg4: memref<8x8x8xf32, #tpu.memory_space<vmem>>, %arg5: memref<8x5xf32, #tpu.memory_space<vmem>>, %arg6: memref<8x1xi32, #tpu.memory_space<vmem>>, %arg7: memref<1x1x4xf32, #tpu.memory_space<vmem>>, %arg8: memref<1x1x1xf32, #tpu.memory_space<vmem>>, %arg9: memref<1x1x1xf32, #tpu.memory_space<vmem>>, %arg10: memref<1x1x1xf32, #tpu.memory_space<vmem>>, %arg11: memref<8x4xf32, #tpu.memory_space<vmem>>, %arg12: memref<8x4xf32, #tpu.memory_space<vmem>>, %arg13: memref<8x4xf32, #tpu.memory_space<vmem>>, %arg14: memref<8x1xf32, #tpu.memory_space<vmem>>) attributes {dimension_semantics = [#tpu.dimension_semantics<parallel>, #tpu.dimension_semantics<arbitrary>], iteration_bounds = array<i64: 2, 2>, scalar_prefetch = 0 : i64, scratch_operands = 4 : i64, tpu.core_type = #tpu.core_type<tc>, window_params = [{transform_indices = @transform_0, window_bounds = array<i64: 8, 4>}, {transform_indices = @transform_1, window_bounds = array<i64: 8, 4>}, {transform_indices = @transform_2, window_bounds = array<i64: 8, 8, 8>}, {transform_indices = @transform_3, window_bounds = array<i64: 8, 5>}, {transform_indices = @transform_4, window_bounds = array<i64: 8, 1>}, {transform_indices = @transform_5, window_bounds = array<i64: 1, 1, 4>}, {transform_indices = @transform_6, window_bounds = array<i64: 1, 1, 1>}, {transform_indices = @transform_7, window_bounds = array<i64: 1, 1, 1>}, {transform_indices = @transform_8, window_bounds = array<i64: 1, 1, 1>}]} {
    %c0_i32 = arith.constant 0 : i32
    %0 = arith.cmpi eq, %arg1, %c0_i32 : i32
    %1 = arith.extui %0 : i1 to i32
    %c0_i32_0 = arith.constant 0 : i32
    %2 = arith.cmpi ne, %1, %c0_i32_0 : i32
    scf.if %2 {
      %cst_40 = arith.constant 0.000000e+00 : f32
      %83 = vector.broadcast %cst_40 : f32 to vector<8x4xf32>
      %c0_41 = arith.constant 0 : index
      %c0_42 = arith.constant 0 : index
      %84 = vector.load %arg11[%c0_41, %c0_42] : memref<8x4xf32, #tpu.memory_space<vmem>>, vector<8x4xf32>
      tpu.vector_store %arg11[%c0_41, %c0_42], %83 {strides = array<i32>} : memref<8x4xf32, #tpu.memory_space<vmem>>, vector<8x4xf32>,
      %cst_43 = arith.constant 0.000000e+00 : f32
      %85 = vector.broadcast %cst_43 : f32 to vector<8x4xf32>
      %c0_44 = arith.constant 0 : index
      %c0_45 = arith.constant 0 : index
      %86 = vector.load %arg12[%c0_44, %c0_45] : memref<8x4xf32, #tpu.memory_space<vmem>>, vector<8x4xf32>
      tpu.vector_store %arg12[%c0_44, %c0_45], %85 {strides = array<i32>} : memref<8x4xf32, #tpu.memory_space<vmem>>, vector<8x4xf32>,
      %cst_46 = arith.constant 0.000000e+00 : f32
      %87 = vector.broadcast %cst_46 : f32 to vector<8x4xf32>
      %c0_47 = arith.constant 0 : index
      %c0_48 = arith.constant 0 : index
      %88 = vector.load %arg13[%c0_47, %c0_48] : memref<8x4xf32, #tpu.memory_space<vmem>>, vector<8x4xf32>
      tpu.vector_store %arg13[%c0_47, %c0_48], %87 {strides = array<i32>} : memref<8x4xf32, #tpu.memory_space<vmem>>, vector<8x4xf32>,
      %cst_49 = arith.constant 0.000000e+00 : f32
      %89 = vector.broadcast %cst_49 : f32 to vector<8x1xf32>
      %c0_50 = arith.constant 0 : index
      %c0_51 = arith.constant 0 : index
      %90 = vector.load %arg14[%c0_50, %c0_51] : memref<8x1xf32, #tpu.memory_space<vmem>>, vector<8x1xf32>
      tpu.vector_store %arg14[%c0_50, %c0_51], %89 {strides = array<i32>} : memref<8x1xf32, #tpu.memory_space<vmem>>, vector<8x1xf32>,
    } else {
    }
    %c2_i32 = arith.constant 2 : i32
    %3 = arith.muli %arg0, %c2_i32 : i32
    %4 = arith.addi %3, %arg1 : i32
    %c8_i32 = arith.constant 8 : i32
    %5 = arith.muli %4, %c8_i32 : i32
    %6 = tpu.iota {dimensions = array<i32: 0>} : vector<8x1xi32>
    %7 = vector.broadcast %5 : i32 to vector<8x1xi32>
    %8 = arith.addi %6, %7 : vector<8x1xi32>
    %c28_i32 = arith.constant 28 : i32
    %9 = vector.broadcast %c28_i32 : i32 to vector<8x1xi32>
    %10 = arith.cmpi slt, %8, %9 : vector<8x1xi32>
    %c0 = arith.constant 0 : index
    %c0_1 = arith.constant 0 : index
    %11 = vector.load %arg2[%c0, %c0_1] : memref<8x4xf32, #tpu.memory_space<vmem>>, vector<8x4xf32>
    %c0_2 = arith.constant 0 : index
    %c0_3 = arith.constant 0 : index
    %12 = vector.load %arg3[%c0_2, %c0_3] : memref<8x4xf32, #tpu.memory_space<vmem>>, vector<8x4xf32>
    %cst = arith.constant 0.000000e+00 : f32
    %13 = vector.broadcast %cst : f32 to vector<8x4xf32>
    %14 = arith.maximumf %11, %13 : vector<8x4xf32>
    %15 = arith.mulf %11, %12 : vector<8x4xf32>
    %16 = arith.subf %14, %15 : vector<8x4xf32>
    %17 = math.absf %11 : vector<8x4xf32>
    %cst_4 = arith.constant 0.000000e+00 : f32
    %18 = vector.broadcast %cst_4 : f32 to vector<8x4xf32>
    %19 = arith.subf %18, %17 : vector<8x4xf32>
    %20 = math.exp %19 : vector<8x4xf32>
    %cst_5 = arith.constant 1.000000e+00 : f32
    %21 = vector.broadcast %cst_5 : f32 to vector<8x4xf32>
    %22 = arith.addf %21, %20 : vector<8x4xf32>
    %23 = math.log %22 : vector<8x4xf32>
    %24 = arith.addf %16, %23 : vector<8x4xf32>
    %cst_6 = arith.constant 0.000000e+00 : f32
    %25 = vector.shape_cast %10 : vector<8x1xi1> to vector<8x1xi1>
    %26 = vector.broadcast %25 : vector<8x1xi1> to vector<8x4xi1>
    %27 = vector.broadcast %cst_6 : f32 to vector<8x4xf32>
    %28 = arith.select %26, %24, %27 : vector<8x4xi1>, vector<8x4xf32>
    %c0_7 = arith.constant 0 : index
    %c0_8 = arith.constant 0 : index
    %29 = vector.load %arg11[%c0_7, %c0_8] : memref<8x4xf32, #tpu.memory_space<vmem>>, vector<8x4xf32>
    %30 = arith.addf %29, %28 : vector<8x4xf32>
    %c0_9 = arith.constant 0 : index
    %c0_10 = arith.constant 0 : index
    %31 = vector.load %arg11[%c0_9, %c0_10] : memref<8x4xf32, #tpu.memory_space<vmem>>, vector<8x4xf32>
    tpu.vector_store %arg11[%c0_9, %c0_10], %30 {strides = array<i32>} : memref<8x4xf32, #tpu.memory_space<vmem>>, vector<8x4xf32>,
    %c0_11 = arith.constant 0 : index
    %c0_12 = arith.constant 0 : index
    %c0_13 = arith.constant 0 : index
    %32 = vector.load %arg4[%c0_11, %c0_12, %c0_13] : memref<8x8x8xf32, #tpu.memory_space<vmem>>, vector<8x8x8xf32>
    %cst_14 = arith.constant dense<0x7F800000> : vector<8x8xf32>
    %33 = vector.multi_reduction <minimumf>, %32, %cst_14 [2] : vector<8x8x8xf32> to vector<8x8xf32>
    %cst_15 = arith.constant 5.000000e-01 : f32
    %34 = vector.broadcast %cst_15 : f32 to vector<8x4xf32>
    %35 = arith.cmpf ogt, %12, %34 : vector<8x4xf32>
    %36 = vector.extract_strided_slice %33 {offsets = [0, 0], sizes = [8, 4], strides = [1, 1]} : vector<8x8xf32> to vector<8x4xf32>
    %37 = vector.extract_strided_slice %33 {offsets = [0, 4], sizes = [8, 4], strides = [1, 1]} : vector<8x8xf32> to vector<8x4xf32>
    %38 = arith.select %35, %36, %37 : vector<8x4xi1>, vector<8x4xf32>
    %39 = vector.extract_strided_slice %33 {offsets = [0, 4], sizes = [8, 4], strides = [1, 1]} : vector<8x8xf32> to vector<8x4xf32>
    %40 = vector.extract_strided_slice %33 {offsets = [0, 0], sizes = [8, 4], strides = [1, 1]} : vector<8x8xf32> to vector<8x4xf32>
    %41 = arith.select %35, %39, %40 : vector<8x4xi1>, vector<8x4xf32>
    %cst_16 = arith.constant 0.000000e+00 : f32
    %42 = vector.shape_cast %10 : vector<8x1xi1> to vector<8x1xi1>
    %43 = vector.broadcast %42 : vector<8x1xi1> to vector<8x4xi1>
    %44 = vector.broadcast %cst_16 : f32 to vector<8x4xf32>
    %45 = arith.select %43, %38, %44 : vector<8x4xi1>, vector<8x4xf32>
    %cst_17 = arith.constant 0.000000e+00 : f32
    %46 = vector.shape_cast %10 : vector<8x1xi1> to vector<8x1xi1>
    %47 = vector.broadcast %46 : vector<8x1xi1> to vector<8x4xi1>
    %48 = vector.broadcast %cst_17 : f32 to vector<8x4xf32>
    %49 = arith.select %47, %41, %48 : vector<8x4xi1>, vector<8x4xf32>
    %c0_18 = arith.constant 0 : index
    %c0_19 = arith.constant 0 : index
    %50 = vector.load %arg12[%c0_18, %c0_19] : memref<8x4xf32, #tpu.memory_space<vmem>>, vector<8x4xf32>
    %51 = arith.addf %50, %45 : vector<8x4xf32>
    %c0_20 = arith.constant 0 : index
    %c0_21 = arith.constant 0 : index
    %52 = vector.load %arg12[%c0_20, %c0_21] : memref<8x4xf32, #tpu.memory_space<vmem>>, vector<8x4xf32>
    tpu.vector_store %arg12[%c0_20, %c0_21], %51 {strides = array<i32>} : memref<8x4xf32, #tpu.memory_space<vmem>>, vector<8x4xf32>,
    %c0_22 = arith.constant 0 : index
    %c0_23 = arith.constant 0 : index
    %53 = vector.load %arg13[%c0_22, %c0_23] : memref<8x4xf32, #tpu.memory_space<vmem>>, vector<8x4xf32>
    %54 = arith.addf %53, %49 : vector<8x4xf32>
    %c0_24 = arith.constant 0 : index
    %c0_25 = arith.constant 0 : index
    %55 = vector.load %arg13[%c0_24, %c0_25] : memref<8x4xf32, #tpu.memory_space<vmem>>, vector<8x4xf32>
    tpu.vector_store %arg13[%c0_24, %c0_25], %54 {strides = array<i32>} : memref<8x4xf32, #tpu.memory_space<vmem>>, vector<8x4xf32>,
    %c0_26 = arith.constant 0 : index
    %c0_27 = arith.constant 0 : index
    %56 = vector.load %arg5[%c0_26, %c0_27] : memref<8x5xf32, #tpu.memory_space<vmem>>, vector<8x5xf32>
    %c0_28 = arith.constant 0 : index
    %c0_29 = arith.constant 0 : index
    %57 = vector.load %arg6[%c0_28, %c0_29] : memref<8x1xi32, #tpu.memory_space<vmem>>, vector<8x1xi32>
    %cst_30 = arith.constant dense<0xFF800000> : vector<8xf32>
    %58 = vector.multi_reduction <maximumf>, %56, %cst_30 [1] : vector<8x5xf32> to vector<8xf32>
    %59 = vector.shape_cast %58 : vector<8xf32> to vector<8x1xf32>
    %60 = vector.broadcast %59 : vector<8x1xf32> to vector<8x5xf32>
    %61 = arith.subf %56, %60 : vector<8x5xf32>
    %62 = math.exp %61 : vector<8x5xf32>
    %cst_31 = arith.constant dense<0.000000e+00> : vector<8xf32>
    %63 = vector.multi_reduction <add>, %62, %cst_31 [1] : vector<8x5xf32> to vector<8xf32>
    %64 = vector.shape_cast %63 : vector<8xf32> to vector<8x1xf32>
    %65 = math.log %64 : vector<8x1xf32>
    %66 = arith.addf %65, %59 : vector<8x1xf32>
    %67 = tpu.iota {dimensions = array<i32: 1>} : vector<8x5xi32>
    %68 = vector.broadcast %57 : vector<8x1xi32> to vector<8x5xi32>
    %69 = arith.cmpi eq, %67, %68 : vector<8x5xi32>
    %cst_32 = arith.constant 0.000000e+00 : f32
    %70 = vector.broadcast %cst_32 : f32 to vector<8x5xf32>
    %71 = arith.select %69, %56, %70 : vector<8x5xi1>, vector<8x5xf32>
    %cst_33 = arith.constant dense<0.000000e+00> : vector<8xf32>
    %72 = vector.multi_reduction <add>, %71, %cst_33 [1] : vector<8x5xf32> to vector<8xf32>
    %73 = vector.shape_cast %72 : vector<8xf32> to vector<8x1xf32>
    %74 = arith.subf %66, %73 : vector<8x1xf32>
    %cst_34 = arith.constant 0.000000e+00 : f32
    %75 = vector.broadcast %cst_34 : f32 to vector<8x1xf32>
    %76 = arith.select %10, %74, %75 : vector<8x1xi1>, vector<8x1xf32>
    %c0_35 = arith.constant 0 : index
    %c0_36 = arith.constant 0 : index
    %77 = vector.load %arg14[%c0_35, %c0_36] : memref<8x1xf32, #tpu.memory_space<vmem>>, vector<8x1xf32>
    %78 = arith.addf %77, %76 : vector<8x1xf32>
    %c0_37 = arith.constant 0 : index
    %c0_38 = arith.constant 0 : index
    %79 = vector.load %arg14[%c0_37, %c0_38] : memref<8x1xf32, #tpu.memory_space<vmem>>, vector<8x1xf32>
    tpu.vector_store %arg14[%c0_37, %c0_38], %78 {strides = array<i32>} : memref<8x1xf32, #tpu.memory_space<vmem>>, vector<8x1xf32>,
    %c1_i32 = arith.constant 1 : i32
    %80 = arith.cmpi eq, %arg1, %c1_i32 : i32
    %81 = arith.extui %80 : i1 to i32
    %c0_i32_39 = arith.constant 0 : i32
    %82 = arith.cmpi ne, %81, %c0_i32_39 : i32
    scf.if %82 {
      %c0_40 = arith.constant 0 : index
      %c0_41 = arith.constant 0 : index
      %83 = vector.load %arg11[%c0_40, %c0_41] : memref<8x4xf32, #tpu.memory_space<vmem>>, vector<8x4xf32>
      %cst_42 = arith.constant dense<0.000000e+00> : vector<4xf32>
      %84 = vector.multi_reduction <add>, %83, %cst_42 [0] : vector<8x4xf32> to vector<4xf32>
      %85 = vector.shape_cast %84 : vector<4xf32> to vector<1x4xf32>
      %c0_43 = arith.constant 0 : index
      %c0_44 = arith.constant 0 : index
      %c0_45 = arith.constant 0 : index
      %86 = vector.load %arg7[%c0_43, %c0_44, %c0_45] : memref<1x1x4xf32, #tpu.memory_space<vmem>>, vector<1x1x4xf32>
      %87 = vector.shape_cast %86 : vector<1x1x4xf32> to vector<1x4xf32>
      %88 = vector.shape_cast %85 : vector<1x4xf32> to vector<1x1x4xf32>
      tpu.vector_store %arg7[%c0_43, %c0_44, %c0_45], %88 {strides = array<i32>} : memref<1x1x4xf32, #tpu.memory_space<vmem>>, vector<1x1x4xf32>,
      %c0_46 = arith.constant 0 : index
      %c0_47 = arith.constant 0 : index
      %89 = vector.load %arg12[%c0_46, %c0_47] : memref<8x4xf32, #tpu.memory_space<vmem>>, vector<8x4xf32>
      %90 = vector.shape_cast %89 : vector<8x4xf32> to vector<1x8x4xf32>
      %cst_48 = arith.constant dense<0.000000e+00> : vector<1xf32>
      %91 = vector.multi_reduction <add>, %90, %cst_48 [1, 2] : vector<1x8x4xf32> to vector<1xf32>
      %92 = vector.shape_cast %91 : vector<1xf32> to vector<1x1x1xf32>
      %93 = vector.extract %92[0, 0, 0] : f32 from vector<1x1x1xf32>
      %94 = vector.broadcast %93 : f32 to vector<1x1xf32>
      %c0_49 = arith.constant 0 : index
      %c0_50 = arith.constant 0 : index
      %c0_51 = arith.constant 0 : index
      %95 = vector.load %arg8[%c0_49, %c0_50, %c0_51] : memref<1x1x1xf32, #tpu.memory_space<vmem>>, vector<1x1x1xf32>
      %96 = vector.shape_cast %95 : vector<1x1x1xf32> to vector<1x1xf32>
      %97 = vector.shape_cast %94 : vector<1x1xf32> to vector<1x1x1xf32>
      tpu.vector_store %arg8[%c0_49, %c0_50, %c0_51], %97 {strides = array<i32>} : memref<1x1x1xf32, #tpu.memory_space<vmem>>, vector<1x1x1xf32>,
      %c0_52 = arith.constant 0 : index
      %c0_53 = arith.constant 0 : index
      %98 = vector.load %arg13[%c0_52, %c0_53] : memref<8x4xf32, #tpu.memory_space<vmem>>, vector<8x4xf32>
      %99 = vector.shape_cast %98 : vector<8x4xf32> to vector<1x8x4xf32>
      %cst_54 = arith.constant dense<0.000000e+00> : vector<1xf32>
      %100 = vector.multi_reduction <add>, %99, %cst_54 [1, 2] : vector<1x8x4xf32> to vector<1xf32>
      %101 = vector.shape_cast %100 : vector<1xf32> to vector<1x1x1xf32>
      %102 = vector.extract %101[0, 0, 0] : f32 from vector<1x1x1xf32>
      %103 = vector.broadcast %102 : f32 to vector<1x1xf32>
      %c0_55 = arith.constant 0 : index
      %c0_56 = arith.constant 0 : index
      %c0_57 = arith.constant 0 : index
      %104 = vector.load %arg9[%c0_55, %c0_56, %c0_57] : memref<1x1x1xf32, #tpu.memory_space<vmem>>, vector<1x1x1xf32>
      %105 = vector.shape_cast %104 : vector<1x1x1xf32> to vector<1x1xf32>
      %106 = vector.shape_cast %103 : vector<1x1xf32> to vector<1x1x1xf32>
      tpu.vector_store %arg9[%c0_55, %c0_56, %c0_57], %106 {strides = array<i32>} : memref<1x1x1xf32, #tpu.memory_space<vmem>>, vector<1x1x1xf32>,
      %c0_58 = arith.constant 0 : index
      %c0_59 = arith.constant 0 : index
      %107 = vector.load %arg14[%c0_58, %c0_59] : memref<8x1xf32, #tpu.memory_space<vmem>>, vector<8x1xf32>
      %108 = vector.shape_cast %107 : vector<8x1xf32> to vector<1x8x1xf32>
      %cst_60 = arith.constant dense<0.000000e+00> : vector<1xf32>
      %109 = vector.multi_reduction <add>, %108, %cst_60 [1, 2] : vector<1x8x1xf32> to vector<1xf32>
      %110 = vector.shape_cast %109 : vector<1xf32> to vector<1x1x1xf32>
      %111 = vector.extract %110[0, 0, 0] : f32 from vector<1x1x1xf32>
      %112 = vector.broadcast %111 : f32 to vector<1x1xf32>
      %c0_61 = arith.constant 0 : index
      %c0_62 = arith.constant 0 : index
      %c0_63 = arith.constant 0 : index
      %113 = vector.load %arg10[%c0_61, %c0_62, %c0_63] : memref<1x1x1xf32, #tpu.memory_space<vmem>>, vector<1x1x1xf32>
      %114 = vector.shape_cast %113 : vector<1x1x1xf32> to vector<1x1xf32>
      %115 = vector.shape_cast %112 : vector<1x1xf32> to vector<1x1x1xf32>
      tpu.vector_store %arg10[%c0_61, %c0_62, %c0_63], %115 {strides = array<i32>} : memref<1x1x1xf32, #tpu.memory_space<vmem>>, vector<1x1x1xf32>,
    } else {
    }
    return
  }
  func.func @transform_0(%arg0: i32, %arg1: i32) -> (i32, i32) {
    %c2_i32 = arith.constant 2 : i32
    %0 = arith.muli %arg0, %c2_i32 : i32
    %1 = arith.addi %0, %arg1 : i32
    %c3_i32 = arith.constant 3 : i32
    %2 = arith.minsi %1, %c3_i32 : i32
    %c0_i32 = arith.constant 0 : i32
    %c0_i32_0 = arith.constant 0 : i32
    return %2, %c0_i32 : i32, i32
  }
  func.func @transform_1(%arg0: i32, %arg1: i32) -> (i32, i32) {
    %c2_i32 = arith.constant 2 : i32
    %0 = arith.muli %arg0, %c2_i32 : i32
    %1 = arith.addi %0, %arg1 : i32
    %c3_i32 = arith.constant 3 : i32
    %2 = arith.minsi %1, %c3_i32 : i32
    %c0_i32 = arith.constant 0 : i32
    %c0_i32_0 = arith.constant 0 : i32
    return %2, %c0_i32 : i32, i32
  }
  func.func @transform_2(%arg0: i32, %arg1: i32) -> (i32, i32, i32) {
    %c2_i32 = arith.constant 2 : i32
    %0 = arith.muli %arg0, %c2_i32 : i32
    %1 = arith.addi %0, %arg1 : i32
    %c3_i32 = arith.constant 3 : i32
    %2 = arith.minsi %1, %c3_i32 : i32
    %c0_i32 = arith.constant 0 : i32
    %c0_i32_0 = arith.constant 0 : i32
    %c0_i32_1 = arith.constant 0 : i32
    return %2, %c0_i32, %c0_i32_0 : i32, i32, i32
  }
  func.func @transform_3(%arg0: i32, %arg1: i32) -> (i32, i32) {
    %c2_i32 = arith.constant 2 : i32
    %0 = arith.muli %arg0, %c2_i32 : i32
    %1 = arith.addi %0, %arg1 : i32
    %c3_i32 = arith.constant 3 : i32
    %2 = arith.minsi %1, %c3_i32 : i32
    %c0_i32 = arith.constant 0 : i32
    %c0_i32_0 = arith.constant 0 : i32
    return %2, %c0_i32 : i32, i32
  }
  func.func @transform_4(%arg0: i32, %arg1: i32) -> (i32, i32) {
    %c2_i32 = arith.constant 2 : i32
    %0 = arith.muli %arg0, %c2_i32 : i32
    %1 = arith.addi %0, %arg1 : i32
    %c3_i32 = arith.constant 3 : i32
    %2 = arith.minsi %1, %c3_i32 : i32
    %c0_i32 = arith.constant 0 : i32
    %c0_i32_0 = arith.constant 0 : i32
    return %2, %c0_i32 : i32, i32
  }
  func.func @transform_5(%arg0: i32, %arg1: i32) -> (i32, i32, i32) {
    %c0_i32 = arith.constant 0 : i32
    %c0_i32_0 = arith.constant 0 : i32
    %c0_i32_1 = arith.constant 0 : i32
    return %arg0, %c0_i32, %c0_i32_0 : i32, i32, i32
  }
  func.func @transform_6(%arg0: i32, %arg1: i32) -> (i32, i32, i32) {
    %c0_i32 = arith.constant 0 : i32
    %c0_i32_0 = arith.constant 0 : i32
    %c0_i32_1 = arith.constant 0 : i32
    return %arg0, %c0_i32, %c0_i32_0 : i32, i32, i32
  }
  func.func @transform_7(%arg0: i32, %arg1: i32) -> (i32, i32, i32) {
    %c0_i32 = arith.constant 0 : i32
    %c0_i32_0 = arith.constant 0 : i32
    %c0_i32_1 = arith.constant 0 : i32
    return %arg0, %c0_i32, %c0_i32_0 : i32, i32, i32
  }
  func.func @transform_8(%arg0: i32, %arg1: i32) -> (i32, i32, i32) {
    %c0_i32 = arith.constant 0 : i32
    %c0_i32_0 = arith.constant 0 : i32
    %c0_i32_1 = arith.constant 0 : i32
    return %arg0, %c0_i32, %c0_i32_0 : i32, i32, i32
  }
}

</mosaic_0001>

<llo_original>
// kernel: tpu_custom_call.1
$region0: #{tpu_custom_call.1}
  #allocation0 [shape = 'u32[]', space=smem, size = 0x4, offset = 0x4, fixed_abs, tag = 'smem constant byte address 0x4 - core index']
  #allocation1 [shape = 'u32[144,128]{1,0:T(1,128)}', space=vmem, size = 0x12000, scoped, tag = 'internal scratch']
  #allocation2 [shape = 'f32[8,4]{1,0:T(8,128)}', space=vmem, size = 0x1000, scoped, tag = 'scratch operand']
  #allocation3 [shape = 'f32[8,4]{1,0:T(8,128)}', space=vmem, size = 0x1000, scoped, tag = 'scratch operand']
  #allocation4 [shape = 'f32[8,4]{1,0:T(8,128)}', space=vmem, size = 0x1000, scoped, tag = 'scratch operand']
  #allocation5 [shape = 'f32[8,1]{1,0:T(8,128)}', space=vmem, size = 0x1000, scoped, tag = 'scratch operand']
  %s0 = inlined_call_operand.vmem [shape: f32[28,4], index: 0, kind: input, shape index: {}]
  %s1 = inlined_call_operand.vmem [shape: f32[28,4], index: 1, kind: input, shape index: {}]
  %s2 = inlined_call_operand.vmem [shape: f32[28,8,8], index: 2, kind: input, shape index: {}]
  %s3 = inlined_call_operand.vmem [shape: f32[28,5], index: 3, kind: input, shape index: {}]
  %s4 = inlined_call_operand.vmem [shape: s32[28,1], index: 4, kind: input, shape index: {}]
  %s5 = inlined_call_operand.hbm [shape: f32[2,1,4], index: 5, kind: output, shape index: {0}]
  %s6 = inlined_call_operand.vmem [shape: f32[2,1,1], index: 6, kind: output, shape index: {1}]
  %s7 = inlined_call_operand.vmem [shape: f32[2,1,1], index: 7, kind: output, shape index: {2}]
  %s8 = inlined_call_operand.vmem [shape: f32[2,1,1], index: 8, kind: output, shape index: {3}]
  %9 = xla_tuple %s5, %s6, %s7, %s8
  %s10 = sld [smem:[#allocation0]]
  $region85: #{tpu_custom_call.1} parent=0
    _
  %s12 = ssub.s32 1, %s10
  %s13 = scalar_select 0, %s12, %s10
  $region1: #{tpu_custom_call.1} parent=0
    #allocation6 [shape = 'u8[1024]{0}', space=vmem, size = 0x400, scoped, tag = 'output window, operand 0']
    #allocation7 [shape = 's32[2]{0}', space=sflag, size = 0x8, scoped, tag = 'scoped memory for tpu_custom_call.1']
    %14 = vsyncpa [#allocation7], 0
    %s15 = scalar_lea.sflag [#allocation7], 1
    %16 = vsyncpa %s15, 0
    loop: start=0, step=1, limit=6
    $region2: #{tpu_custom_call.1} parent=1 // loop_pre_header
      _
    $region3: #{tpu_custom_call.1} parent=1 // loop_header
      %s18 = sphi 0, %s22
      %p19 = scmp.ge.s32.totalorder %s18, 6
      %s25 = sphi 0, %s37
      %s26 = sphi 0, %s33
      %s27 = sphi 0, %s25
      %s28 = sphi 0, %s26
      %s29 = sphi 0, %s27
      %s30 = sphi 0, %s28
      %s48 = sphi 0, %s50
      %s51 = sphi 0, %s48
      %s52 = sphi 0, %s51
      %s68 = sphi 0, %s52
      %s82 = sphi 0, %s84
      %s85 = sphi 0, %s82
      %s86 = sphi 0, %s85
      %s102 = sphi 0, %s86
      %s116 = sphi 0, %s118
      %s119 = sphi 0, %s116
      %s120 = sphi 0, %s119
      %s136 = sphi 0, %s120
      %s150 = sphi 0, %s152
      %s153 = sphi 0, %s150
      %s154 = sphi 0, %s153
      %s170 = sphi 0, %s154
      %s184 = sphi 0, %s186
      %s187 = sphi 0, %s184
      %s188 = sphi 0, %s187
      %s204 = sphi 0, %s188
      %s210 = sphi 0, %s212
      %s213 = sphi 0, %s210
      %s214 = sphi 0, %s213
      %s230 = sphi 0, %s214
      %s236 = sphi 0, %s238
      %s239 = sphi 0, %s236
      %s240 = sphi 0, %s239
      %s256 = sphi 0, %s240
      %s262 = sphi 0, %s264
      %s265 = sphi 0, %s262
      %s266 = sphi 0, %s265
      %s282 = sphi 0, %s266
      %s288 = sphi 0, %s290
      %s291 = sphi 0, %s288
      %s292 = sphi 0, %s291
      %s308 = sphi 0, %s292
    $region4: #{tpu_custom_call.1} parent=1 // loop_header_branch
      %21 = sbr.rel (%p19) target = $region8
    $region5: #{tpu_custom_call.1} parent=1 // loop_body
      %s23 = ssub.s32 %s18, 1
      %s24 = ssub.s32 %s18, 2
      %s31 = sadd.s32 1, %s26
      %p32 = scmp.ge.s32.totalorder %s31, 2
      %s33 = scalar_select %p32, 0, %s31
      %s34 = sadd.s32 1, %s25
      %s35 = scalar_select %p32, %s34, %s25
      %p36 = scmp.ge.s32.totalorder %s35, 2
      %s37 = scalar_select %p36, 0, %s35
      %s38 = smul.u32 %s25, 2
      %s39 = sadd.s32 %s38, %s26
      %p40 = scmp.lt.s32.totalorder %s39, 3
      %s41 = scalar_select %p40, %s39, 3
      %s42 = smul.u32 %s37, 2
      %s43 = sadd.s32 %s42, %s33
      %p44 = scmp.lt.s32.totalorder %s43, 3
      %s45 = scalar_select %p44, %s43, 3
      %s46 = ssub.s32 %s41, %s45
      %p47 = scmp.eq.s32.totalorder %s46, 0
      %s49 = sadd.s32 %s48, 1
      %s50 = scalar_select %p47, %s48, %s49
      %p53 = pneg %p47
      %p54 = scmp.eq.s32.totalorder %s18, 3
      %p55 = por %p53, %p54
      %p56 = scmp.ne.s32.totalorder %s48, %s51
      %p57 = scmp.eq.s32.totalorder %s18, 0
      %p58 = por %p56, %p57
      %p59 = scmp.ne.s32.totalorder %s48, %s51
      %p60 = scmp.eq.s32.totalorder %s23, 3
      %p61 = por %p59, %p60
      %p62 = scmp.ne.s32.totalorder %s51, %s52
      %p63 = scmp.eq.s32.totalorder %s23, 0
      %p64 = por %p62, %p63
      %p65 = scmp.ne.s32.totalorder %s51, %s52
      %p66 = scmp.eq.s32.totalorder %s24, 3
      %p67 = por %p65, %p66
      %p69 = scmp.ne.s32.totalorder %s52, %s68
      %p70 = scmp.eq.s32.totalorder %s24, 0
      %p71 = por %p69, %p70
      %s72 = smul.u32 %s25, 2
      %s73 = sadd.s32 %s72, %s26
      %p74 = scmp.lt.s32.totalorder %s73, 3
      %s75 = scalar_select %p74, %s73, 3
      %s76 = smul.u32 %s37, 2
      %s77 = sadd.s32 %s76, %s33
      %p78 = scmp.lt.s32.totalorder %s77, 3
      %s79 = scalar_select %p78, %s77, 3
      %s80 = ssub.s32 %s75, %s79
      %p81 = scmp.eq.s32.totalorder %s80, 0
      %s83 = sadd.s32 %s82, 1
      %s84 = scalar_select %p81, %s82, %s83
      %p87 = pneg %p81
      %p88 = scmp.eq.s32.totalorder %s18, 3
      %p89 = por %p87, %p88
      %p90 = scmp.ne.s32.totalorder %s82, %s85
      %p91 = scmp.eq.s32.totalorder %s18, 0
      %p92 = por %p90, %p91
      %p93 = scmp.ne.s32.totalorder %s82, %s85
      %p94 = scmp.eq.s32.totalorder %s23, 3
      %p95 = por %p93, %p94
      %p96 = scmp.ne.s32.totalorder %s85, %s86
      %p97 = scmp.eq.s32.totalorder %s23, 0
      %p98 = por %p96, %p97
      %p99 = scmp.ne.s32.totalorder %s85, %s86
      %p100 = scmp.eq.s32.totalorder %s24, 3
      %p101 = por %p99, %p100
      %p103 = scmp.ne.s32.totalorder %s86, %s102
      %p104 = scmp.eq.s32.totalorder %s24, 0
      %p105 = por %p103, %p104
      %s106 = smul.u32 %s25, 2
      %s107 = sadd.s32 %s106, %s26
      %p108 = scmp.lt.s32.totalorder %s107, 3
      %s109 = scalar_select %p108, %s107, 3
      %s110 = smul.u32 %s37, 2
      %s111 = sadd.s32 %s110, %s33
      %p112 = scmp.lt.s32.totalorder %s111, 3
      %s113 = scalar_select %p112, %s111, 3
      %s114 = ssub.s32 %s109, %s113
      %p115 = scmp.eq.s32.totalorder %s114, 0
      %s117 = sadd.s32 %s116, 1
      %s118 = scalar_select %p115, %s116, %s117
      %p121 = pneg %p115
      %p122 = scmp.eq.s32.totalorder %s18, 3
      %p123 = por %p121, %p122
      %p124 = scmp.ne.s32.totalorder %s116, %s119
      %p125 = scmp.eq.s32.totalorder %s18, 0
      %p126 = por %p124, %p125
      %p127 = scmp.ne.s32.totalorder %s116, %s119
      %p128 = scmp.eq.s32.totalorder %s23, 3
      %p129 = por %p127, %p128
      %p130 = scmp.ne.s32.totalorder %s119, %s120
      %p131 = scmp.eq.s32.totalorder %s23, 0
      %p132 = por %p130, %p131
      %p133 = scmp.ne.s32.totalorder %s119, %s120
      %p134 = scmp.eq.s32.totalorder %s24, 3
      %p135 = por %p133, %p134
      %p137 = scmp.ne.s32.totalorder %s120, %s136
      %p138 = scmp.eq.s32.totalorder %s24, 0
      %p139 = por %p137, %p138
      %s140 = smul.u32 %s25, 2
      %s141 = sadd.s32 %s140, %s26
      %p142 = scmp.lt.s32.totalorder %s141, 3
      %s143 = scalar_select %p142, %s141, 3
      %s144 = smul.u32 %s37, 2
      %s145 = sadd.s32 %s144, %s33
      %p146 = scmp.lt.s32.totalorder %s145, 3
      %s147 = scalar_select %p146, %s145, 3
      %s148 = ssub.s32 %s143, %s147
      %p149 = scmp.eq.s32.totalorder %s148, 0
      %s151 = sadd.s32 %s150, 1
      %s152 = scalar_select %p149, %s150, %s151
      %p155 = pneg %p149
      %p156 = scmp.eq.s32.totalorder %s18, 3
      %p157 = por %p155, %p156
      %p158 = scmp.ne.s32.totalorder %s150, %s153
      %p159 = scmp.eq.s32.totalorder %s18, 0
      %p160 = por %p158, %p159
      %p161 = scmp.ne.s32.totalorder %s150, %s153
      %p162 = scmp.eq.s32.totalorder %s23, 3
      %p163 = por %p161, %p162
      %p164 = scmp.ne.s32.totalorder %s153, %s154
      %p165 = scmp.eq.s32.totalorder %s23, 0
      %p166 = por %p164, %p165
      %p167 = scmp.ne.s32.totalorder %s153, %s154
      %p168 = scmp.eq.s32.totalorder %s24, 3
      %p169 = por %p167, %p168
      %p171 = scmp.ne.s32.totalorder %s154, %s170
      %p172 = scmp.eq.s32.totalorder %s24, 0
      %p173 = por %p171, %p172
      %s174 = smul.u32 %s25, 2
      %s175 = sadd.s32 %s174, %s26
      %p176 = scmp.lt.s32.totalorder %s175, 3
      %s177 = scalar_select %p176, %s175, 3
      %s178 = smul.u32 %s37, 2
      %s179 = sadd.s32 %s178, %s33
      %p180 = scmp.lt.s32.totalorder %s179, 3
      %s181 = scalar_select %p180, %s179, 3
      %s182 = ssub.s32 %s177, %s181
      %p183 = scmp.eq.s32.totalorder %s182, 0
      %s185 = sadd.s32 %s184, 1
      %s186 = scalar_select %p183, %s184, %s185
      %p189 = pneg %p183
      %p190 = scmp.eq.s32.totalorder %s18, 3
      %p191 = por %p189, %p190
      %p192 = scmp.ne.s32.totalorder %s184, %s187
      %p193 = scmp.eq.s32.totalorder %s18, 0
      %p194 = por %p192, %p193
      %p195 = scmp.ne.s32.totalorder %s184, %s187
      %p196 = scmp.eq.s32.totalorder %s23, 3
      %p197 = por %p195, %p196
      %p198 = scmp.ne.s32.totalorder %s187, %s188
      %p199 = scmp.eq.s32.totalorder %s23, 0
      %p200 = por %p198, %p199
      %p201 = scmp.ne.s32.totalorder %s187, %s188
      %p202 = scmp.eq.s32.totalorder %s24, 3
      %p203 = por %p201, %p202
      %p205 = scmp.ne.s32.totalorder %s188, %s204
      %p206 = scmp.eq.s32.totalorder %s24, 0
      %p207 = por %p205, %p206
      %s208 = ssub.s32 %s25, %s37
      %p209 = scmp.eq.s32.totalorder %s208, 0
      %s211 = sadd.s32 %s210, 1
      %s212 = scalar_select %p209, %s210, %s211
      %p215 = pneg %p209
      %p216 = scmp.eq.s32.totalorder %s18, 3
      %p217 = por %p215, %p216
      %p218 = scmp.ne.s32.totalorder %s210, %s213
      %p219 = scmp.eq.s32.totalorder %s18, 0
      %p220 = por %p218, %p219
      %p221 = scmp.ne.s32.totalorder %s210, %s213
      %p222 = scmp.eq.s32.totalorder %s23, 3
      %p223 = por %p221, %p222
      %p224 = scmp.ne.s32.totalorder %s213, %s214
      %p225 = scmp.eq.s32.totalorder %s23, 0
      %p226 = por %p224, %p225
      %p227 = scmp.ne.s32.totalorder %s213, %s214
      %p228 = scmp.eq.s32.totalorder %s24, 3
      %p229 = por %p227, %p228
      %p231 = scmp.ne.s32.totalorder %s214, %s230
      %p232 = scmp.eq.s32.totalorder %s24, 0
      %p233 = por %p231, %p232
      %s234 = ssub.s32 %s25, %s37
      %p235 = scmp.eq.s32.totalorder %s234, 0
      %s237 = sadd.s32 %s236, 1
      %s238 = scalar_select %p235, %s236, %s237
      %p241 = pneg %p235
      %p242 = scmp.eq.s32.totalorder %s18, 3
      %p243 = por %p241, %p242
      %p244 = scmp.ne.s32.totalorder %s236, %s239
      %p245 = scmp.eq.s32.totalorder %s18, 0
      %p246 = por %p244, %p245
      %p247 = scmp.ne.s32.totalorder %s236, %s239
      %p248 = scmp.eq.s32.totalorder %s23, 3
      %p249 = por %p247, %p248
      %p250 = scmp.ne.s32.totalorder %s239, %s240
      %p251 = scmp.eq.s32.totalorder %s23, 0
      %p252 = por %p250, %p251
      %p253 = scmp.ne.s32.totalorder %s239, %s240
      %p254 = scmp.eq.s32.totalorder %s24, 3
      %p255 = por %p253, %p254
      %p257 = scmp.ne.s32.totalorder %s240, %s256
      %p258 = scmp.eq.s32.totalorder %s24, 0
      %p259 = por %p257, %p258
      %s260 = ssub.s32 %s25, %s37
      %p261 = scmp.eq.s32.totalorder %s260, 0
      %s263 = sadd.s32 %s262, 1
      %s264 = scalar_select %p261, %s262, %s263
      %p267 = pneg %p261
      %p268 = scmp.eq.s32.totalorder %s18, 3
      %p269 = por %p267, %p268
      %p270 = scmp.ne.s32.totalorder %s262, %s265
      %p271 = scmp.eq.s32.totalorder %s18, 0
      %p272 = por %p270, %p271
      %p273 = scmp.ne.s32.totalorder %s262, %s265
      %p274 = scmp.eq.s32.totalorder %s23, 3
      %p275 = por %p273, %p274
      %p276 = scmp.ne.s32.totalorder %s265, %s266
      %p277 = scmp.eq.s32.totalorder %s23, 0
      %p278 = por %p276, %p277
      %p279 = scmp.ne.s32.totalorder %s265, %s266
      %p280 = scmp.eq.s32.totalorder %s24, 3
      %p281 = por %p279, %p280
      %p283 = scmp.ne.s32.totalorder %s266, %s282
      %p284 = scmp.eq.s32.totalorder %s24, 0
      %p285 = por %p283, %p284
      %s286 = ssub.s32 %s25, %s37
      %p287 = scmp.eq.s32.totalorder %s286, 0
      %s289 = sadd.s32 %s288, 1
      %s290 = scalar_select %p287, %s288, %s289
      %p293 = pneg %p287
      %p294 = scmp.eq.s32.totalorder %s18, 3
      %p295 = por %p293, %p294
      %p296 = scmp.ne.s32.totalorder %s288, %s291
      %p297 = scmp.eq.s32.totalorder %s18, 0
      %p298 = por %p296, %p297
      %p299 = scmp.ne.s32.totalorder %s288, %s291
      %p300 = scmp.eq.s32.totalorder %s23, 3
      %p301 = por %p299, %p300
      %p302 = scmp.ne.s32.totalorder %s291, %s292
      %p303 = scmp.eq.s32.totalorder %s23, 0
      %p304 = por %p302, %p303
      %p305 = scmp.ne.s32.totalorder %s291, %s292
      %p306 = scmp.eq.s32.totalorder %s24, 3
      %p307 = por %p305, %p306
      %p309 = scmp.ne.s32.totalorder %s292, %s308
      %p310 = scmp.eq.s32.totalorder %s24, 0
      %p311 = por %p309, %p310
      %p312 = scmp.le.s32.totalorder 1, %s18
      %p313 = scmp.lt.s32.totalorder %s18, 5
      %p314 = pnand %p312, %p313
      %p315 = pneg %p314
      // Predicated region
      $region9: #{tpu_custom_call.1} parent=5 // pred_check
        _
      $region10: #{tpu_custom_call.1} parent=5 // pred_check_branch
        %317 = sbr.rel (%p314) target = $region12
      $region11: #{tpu_custom_call.1} parent=5 // pred_region
        %s318 = ssub.s32 %s18, 1
      $region12: #{tpu_custom_call.1} parent=5 // pred_fallthru
        _
      %p319 = scmp.lt.s32.totalorder %s18, 4
      // Predicated region
      $region13: #{tpu_custom_call.1} parent=5 // pred_check
        %p320 = pneg %p319
      $region14: #{tpu_custom_call.1} parent=5 // pred_check_branch
        %322 = sbr.rel (%p320) target = $region16
      $region15: #{tpu_custom_call.1} parent=5 // pred_region
        // Predicated region
        $region17: #{tpu_custom_call.1} parent=15 // pred_check
          %p323 = pneg %p58
        $region18: #{tpu_custom_call.1} parent=15 // pred_check_branch
          %325 = sbr.rel (%p323) target = $region20
        $region19: #{tpu_custom_call.1} parent=15 // pred_region
          %s326 = smul.u32 %s25, 2
          %s327 = sadd.s32 %s326, %s26
          %p328 = scmp.lt.s32.totalorder %s327, 3
          %s329 = scalar_select %p328, %s327, 3
          %p330 = scmp.lt.s32.totalorder %s329, 3
          %s331 = scalar_select %p330, %s329, 3
          %s332 = smul.addr %s331, 8
          %s333 = scalar_lea.vmem %s0, %s332
          %s334 = smul.u32 %s25, 2
          %s335 = sadd.s32 %s334, %s26
          %p336 = scmp.lt.s32.totalorder %s335, 3
          %s337 = scalar_select %p336, %s335, 3
        $region20: #{tpu_custom_call.1} parent=15 // pred_fallthru
          _
        // Predicated region
        $region21: #{tpu_custom_call.1} parent=15 // pred_check
          %p338 = pneg %p92
        $region22: #{tpu_custom_call.1} parent=15 // pred_check_branch
          %340 = sbr.rel (%p338) target = $region24
        $region23: #{tpu_custom_call.1} parent=15 // pred_region
          %s341 = smul.u32 %s25, 2
          %s342 = sadd.s32 %s341, %s26
          %p343 = scmp.lt.s32.totalorder %s342, 3
          %s344 = scalar_select %p343, %s342, 3
          %p345 = scmp.lt.s32.totalorder %s344, 3
          %s346 = scalar_select %p345, %s344, 3
          %s347 = smul.addr %s346, 8
          %s348 = scalar_lea.vmem %s1, %s347
          %s349 = smul.u32 %s25, 2
          %s350 = sadd.s32 %s349, %s26
          %p351 = scmp.lt.s32.totalorder %s350, 3
          %s352 = scalar_select %p351, %s350, 3
        $region24: #{tpu_custom_call.1} parent=15 // pred_fallthru
          _
        // Predicated region
        $region25: #{tpu_custom_call.1} parent=15 // pred_check
          %p353 = pneg %p126
        $region26: #{tpu_custom_call.1} parent=15 // pred_check_branch
          %355 = sbr.rel (%p353) target = $region28
        $region27: #{tpu_custom_call.1} parent=15 // pred_region
          %s356 = smul.u32 %s25, 2
          %s357 = sadd.s32 %s356, %s26
          %p358 = scmp.lt.s32.totalorder %s357, 3
          %s359 = scalar_select %p358, %s357, 3
          %s360 = smul.u32 8, %s359
          %s361 = ssub.s32 28, %s360
          %p362 = scmp.lt.s32.totalorder %s361, 8
          %s363 = scalar_select %p362, %s361, 8
          %s364 = smul.u32 128, %s363
          %p365 = scmp.lt.s32.totalorder %s360, 27
          %s366 = scalar_select %p365, %s360, 27
          %s367 = smul.addr %s366, 8
          %s368 = scalar_lea.vmem %s2, %s367
          %s369 = smul.u32 %s25, 2
          %s370 = sadd.s32 %s369, %s26
          %p371 = scmp.lt.s32.totalorder %s370, 3
          %s372 = scalar_select %p371, %s370, 3
          %s373 = smul.u32 8, %s372
          %s374 = ssub.s32 28, %s373
          %p375 = scmp.lt.s32.totalorder %s374, 8
          %s376 = scalar_select %p375, %s374, 8
          %s377 = smul.u32 128, %s376
        $region28: #{tpu_custom_call.1} parent=15 // pred_fallthru
          _
        // Predicated region
        $region29: #{tpu_custom_call.1} parent=15 // pred_check
          %p378 = pneg %p160
        $region30: #{tpu_custom_call.1} parent=15 // pred_check_branch
          %380 = sbr.rel (%p378) target = $region32
        $region31: #{tpu_custom_call.1} parent=15 // pred_region
          %s381 = smul.u32 %s25, 2
          %s382 = sadd.s32 %s381, %s26
          %p383 = scmp.lt.s32.totalorder %s382, 3
          %s384 = scalar_select %p383, %s382, 3
          %p385 = scmp.lt.s32.totalorder %s384, 3
          %s386 = scalar_select %p385, %s384, 3
          %s387 = smul.addr %s386, 8
          %s388 = scalar_lea.vmem %s3, %s387
          %s389 = smul.u32 %s25, 2
          %s390 = sadd.s32 %s389, %s26
          %p391 = scmp.lt.s32.totalorder %s390, 3
          %s392 = scalar_select %p391, %s390, 3
        $region32: #{tpu_custom_call.1} parent=15 // pred_fallthru
          _
        // Predicated region
        $region33: #{tpu_custom_call.1} parent=15 // pred_check
          %p393 = pneg %p194
        $region34: #{tpu_custom_call.1} parent=15 // pred_check_branch
          %395 = sbr.rel (%p393) target = $region36
        $region35: #{tpu_custom_call.1} parent=15 // pred_region
          %s396 = smul.u32 %s25, 2
          %s397 = sadd.s32 %s396, %s26
          %p398 = scmp.lt.s32.totalorder %s397, 3
          %s399 = scalar_select %p398, %s397, 3
          %p400 = scmp.lt.s32.totalorder %s399, 3
          %s401 = scalar_select %p400, %s399, 3
          %s402 = smul.addr %s401, 8
          %s403 = scalar_lea.vmem %s4, %s402
          %s404 = smul.u32 %s25, 2
          %s405 = sadd.s32 %s404, %s26
          %p406 = scmp.lt.s32.totalorder %s405, 3
          %s407 = scalar_select %p406, %s405, 3
        $region36: #{tpu_custom_call.1} parent=15 // pred_fallthru
          _
      $region16: #{tpu_custom_call.1} parent=5 // pred_fallthru
        _
      %p408 = scmp.le.s32.totalorder 1, %s18
      %p409 = scmp.lt.s32.totalorder %s18, 5
      %p410 = pnand %p408, %p409
      %p411 = pneg %p410
      // Predicated region
      $region37: #{tpu_custom_call.1} parent=5 // pred_check
        _
      $region38: #{tpu_custom_call.1} parent=5 // pred_check_branch
        %413 = sbr.rel (%p410) target = $region40
      $region39: #{tpu_custom_call.1} parent=5 // pred_region
        %s414 = ssub.s32 %s18, 1
        %s415 = smul.u32 %s27, 2
        %s416 = sadd.s32 %s415, %s28
        %p417 = scmp.lt.s32.totalorder %s416, 3
        %s418 = scalar_select %p417, %s416, 3
        %p419 = scmp.lt.s32.totalorder %s418, 3
        %s420 = scalar_select %p419, %s418, 3
        %s421 = smul.addr %s420, 8
        %s422 = scalar_lea.vmem %s0, %s421
        %p423 = pneg %p64
        %p424 = pneg %p61
        %s425 = smul.u32 %s27, 2
        %s426 = sadd.s32 %s425, %s28
        %p427 = scmp.lt.s32.totalorder %s426, 3
        %s428 = scalar_select %p427, %s426, 3
        %p429 = scmp.lt.s32.totalorder %s428, 3
        %s430 = scalar_select %p429, %s428, 3
        %s431 = smul.addr %s430, 8
        %s432 = scalar_lea.vmem %s1, %s431
        %p433 = pneg %p98
        %p434 = pneg %p95
        %s435 = smul.u32 %s27, 2
        %s436 = sadd.s32 %s435, %s28
        %p437 = scmp.lt.s32.totalorder %s436, 3
        %s438 = scalar_select %p437, %s436, 3
        %s439 = smul.u32 8, %s438
        %s440 = ssub.s32 28, %s439
        %p441 = scmp.lt.s32.totalorder %s440, 8
        %s442 = scalar_select %p441, %s440, 8
        %s443 = smul.u32 128, %s442
        %p444 = scmp.lt.s32.totalorder %s439, 27
        %s445 = scalar_select %p444, %s439, 27
        %s446 = smul.addr %s445, 8
        %s447 = scalar_lea.vmem %s2, %s446
        %p448 = pneg %p132
        %p449 = pneg %p129
        %s450 = smul.u32 %s27, 2
        %s451 = sadd.s32 %s450, %s28
        %p452 = scmp.lt.s32.totalorder %s451, 3
        %s453 = scalar_select %p452, %s451, 3
        %p454 = scmp.lt.s32.totalorder %s453, 3
        %s455 = scalar_select %p454, %s453, 3
        %s456 = smul.addr %s455, 8
        %s457 = scalar_lea.vmem %s3, %s456
        %p458 = pneg %p166
        %p459 = pneg %p163
        %s460 = smul.u32 %s27, 2
        %s461 = sadd.s32 %s460, %s28
        %p462 = scmp.lt.s32.totalorder %s461, 3
        %s463 = scalar_select %p462, %s461, 3
        %p464 = scmp.lt.s32.totalorder %s463, 3
        %s465 = scalar_select %p464, %s463, 3
        %s466 = smul.addr %s465, 8
        %s467 = scalar_lea.vmem %s4, %s466
        %p468 = pneg %p200
        %p469 = pneg %p197
        %p470 = pneg %p226
        %p471 = pneg %p223
        %s472 = sand.u32 %s213, 1
        %s473 = scalar_lea.sflag [#allocation7], %s472
        %s474 = sand.u32 %s213, 1
        %s475 = scalar_lea.vmem [#allocation6], %s474
        %p476 = pneg %p252
        %p477 = pneg %p249
        %p478 = scmp.lt.s32.totalorder %s27, 1
        %s479 = scalar_select %p478, %s27, 1
        %s480 = scalar_lea.vmem %s6, %s479
        %p481 = pneg %p278
        %p482 = pneg %p275
        %p483 = scmp.lt.s32.totalorder %s27, 1
        %s484 = scalar_select %p483, %s27, 1
        %s485 = scalar_lea.vmem %s7, %s484
        %p486 = pneg %p304
        %p487 = pneg %p301
        %p488 = scmp.lt.s32.totalorder %s27, 1
        %s489 = scalar_select %p488, %s27, 1
        %s490 = scalar_lea.vmem %s8, %s489
        %s491 = smul.u32 %s27, 2
        %s492 = sadd.s32 %s491, %s28
        %p493 = scmp.lt.s32.totalorder %s492, 3
        %s494 = scalar_select %p493, %s492, 3
        %p495 = scmp.lt.s32.totalorder %s494, 3
        %s496 = scalar_select %p495, %s494, 3
        %s497 = smul.addr %s496, 8
        %s498 = scalar_lea.vmem %s0, %s497
        %s499 = smul.u32 %s27, 2
        %s500 = sadd.s32 %s499, %s28
        %p501 = scmp.lt.s32.totalorder %s500, 3
        %s502 = scalar_select %p501, %s500, 3
        %s503 = smul.u32 %s27, 2
        %s504 = sadd.s32 %s503, %s28
        %p505 = scmp.lt.s32.totalorder %s504, 3
        %s506 = scalar_select %p505, %s504, 3
        %p507 = scmp.lt.s32.totalorder %s506, 3
        %s508 = scalar_select %p507, %s506, 3
        %s509 = smul.addr %s508, 8
        %s510 = scalar_lea.vmem %s1, %s509
        %s511 = smul.u32 %s27, 2
        %s512 = sadd.s32 %s511, %s28
        %p513 = scmp.lt.s32.totalorder %s512, 3
        %s514 = scalar_select %p513, %s512, 3
        %s515 = smul.u32 %s27, 2
        %s516 = sadd.s32 %s515, %s28
        %p517 = scmp.lt.s32.totalorder %s516, 3
        %s518 = scalar_select %p517, %s516, 3
        %s519 = smul.u32 8, %s518
        %s520 = ssub.s32 28, %s519
        %p521 = scmp.lt.s32.totalorder %s520, 8
        %s522 = scalar_select %p521, %s520, 8
        %s523 = smul.u32 128, %s522
        %p524 = scmp.lt.s32.totalorder %s519, 27
        %s525 = scalar_select %p524, %s519, 27
        %s526 = smul.addr %s525, 8
        %s527 = scalar_lea.vmem %s2, %s526
        %s528 = smul.u32 %s27, 2
        %s529 = sadd.s32 %s528, %s28
        %p530 = scmp.lt.s32.totalorder %s529, 3
        %s531 = scalar_select %p530, %s529, 3
        %s532 = smul.u32 8, %s531
        %s533 = ssub.s32 28, %s532
        %p534 = scmp.lt.s32.totalorder %s533, 8
        %s535 = scalar_select %p534, %s533, 8
        %s536 = smul.u32 128, %s535
        %s537 = smul.u32 %s27, 2
        %s538 = sadd.s32 %s537, %s28
        %p539 = scmp.lt.s32.totalorder %s538, 3
        %s540 = scalar_select %p539, %s538, 3
        %p541 = scmp.lt.s32.totalorder %s540, 3
        %s542 = scalar_select %p541, %s540, 3
        %s543 = smul.addr %s542, 8
        %s544 = scalar_lea.vmem %s3, %s543
        %s545 = smul.u32 %s27, 2
        %s546 = sadd.s32 %s545, %s28
        %p547 = scmp.lt.s32.totalorder %s546, 3
        %s548 = scalar_select %p547, %s546, 3
        %s549 = smul.u32 %s27, 2
        %s550 = sadd.s32 %s549, %s28
        %p551 = scmp.lt.s32.totalorder %s550, 3
        %s552 = scalar_select %p551, %s550, 3
        %p553 = scmp.lt.s32.totalorder %s552, 3
        %s554 = scalar_select %p553, %s552, 3
        %s555 = smul.addr %s554, 8
        %s556 = scalar_lea.vmem %s4, %s555
        %s557 = smul.u32 %s27, 2
        %s558 = sadd.s32 %s557, %s28
        %p559 = scmp.lt.s32.totalorder %s558, 3
        %s560 = scalar_select %p559, %s558, 3
        %p561 = scmp.lt.s32.totalorder %s27, 1
        %s562 = scalar_select %p561, %s27, 1
        %s563 = scalar_lea.vmem %s6, %s562
        %p564 = scmp.lt.s32.totalorder %s27, 1
        %s565 = scalar_select %p564, %s27, 1
        %s566 = scalar_lea.vmem %s7, %s565
        %p567 = scmp.lt.s32.totalorder %s27, 1
        %s568 = scalar_select %p567, %s27, 1
        %s569 = scalar_lea.vmem %s8, %s568
        %p570 = scmp.eq.s32.totalorder %s28, 0
        // Predicated region
        $region41: #{tpu_custom_call.1} parent=39 // pred_check
          %p571 = pneg %p570
        $region42: #{tpu_custom_call.1} parent=39 // pred_check_branch
          %573 = sbr.rel (%p571) target = $region44
        $region43: #{tpu_custom_call.1} parent=39 // pred_region
          %vm574 = vcmask 31744
          %575 = vst.msk [vmem:[#allocation2] sm:$0xff] %vm574, 0.0
          %576 = vst.msk [vmem:[#allocation3] sm:$0xff] %vm574, 0.0
          %577 = vst.msk [vmem:[#allocation4] sm:$0xff] %vm574, 0.0
          %vm578 = vcmask 7168
          %579 = vst.msk [vmem:[#allocation5] sm:$0xff] %vm578, 0.0
        $region44: #{tpu_custom_call.1} parent=39 // pred_fallthru
          _
        %s580 = smul.u32 %s27, 2
        %s581 = sadd.s32 %s580, %s28
        %s582 = smul.u32 %s581, 8
        %v583 = vlaneseq
        %v584 = vshrl.u32 %v583, 7
        %v585 = vstv %s582
        %v586 = vadd.s32 %v584, %v585
        %vm587 = vcmp.lt.s32.totalorder %v586, 28
        %v588 = vld [vmem:[%s498] sm:$0xff]
        %v589 = vld [vmem:[%s510] sm:$0xff]
        %v590 = vmax.f32 %v588, 0.0
        %v591 = vmul.f32 %v588, %v589
        %v592 = vsub.f32 %v590, %v591
        %v593 = vand.u32 2147483647, %v588
        %v594 = vsub.f32 0.0, %v593
        %v595 = vmul.f32 %v594, 1.442695
        %v596 = vpow.pop %v595
        %v597 = vadd.f32 %v596, 1.0
        %v598 = vlog2.pop %v597
        %v599 = vmul.f32 %v598, 0.6931472
        %v600 = vadd.f32 %v592, %v599
        %v601 = vsel %vm587, 1, 0
        %vm602 = vcmp.eq.s32.totalorder %v601, 1
        %v603 = vsel %vm602, %v600, 0.0
        %v604 = vld [vmem:[#allocation2] sm:$0xff]
        %v605 = vadd.f32 %v604, %v603
        %vm606 = vcmask 31744
        %607 = vst.msk [vmem:[#allocation2] sm:$0xff] %vm606, %v605
        %v608 = vld [vmem:[%s527] sm:$0xff]
        %v609 = vld [vmem:[%s527 + $0x8] sm:$0xff]
        %v610 = vld [vmem:[%s527 + $0x10] sm:$0xff]
        %v611 = vld [vmem:[%s527 + $0x18] sm:$0xff]
        %v612 = vld [vmem:[%s527 + $0x20] sm:$0xff]
        %v613 = vld [vmem:[%s527 + $0x28] sm:$0xff]
        %v614 = vld [vmem:[%s527 + $0x30] sm:$0xff]
        %v615 = vld [vmem:[%s527 + $0x38] sm:$0xff]
        %vm616 = vcmask 64512
        %v617 = vsel %vm616, %v608, inf
        %618 = vmin.xlane.f32.xlu0 %v617
        %v619 = vpop.xlane.xlu0 %618
        %v620 = vsel %vm616, %v609, inf
        %621 = vmin.xlane.f32.xlu0 %v620
        %v622 = vpop.xlane.xlu0 %621
        %v623 = vsel %vm616, %v610, inf
        %624 = vmin.xlane.f32.xlu0 %v623
        %v625 = vpop.xlane.xlu0 %624
        %v626 = vsel %vm616, %v611, inf
        %627 = vmin.xlane.f32.xlu0 %v626
        %v628 = vpop.xlane.xlu0 %627
        %v629 = vsel %vm616, %v612, inf
        %630 = vmin.xlane.f32.xlu0 %v629
        %v631 = vpop.xlane.xlu0 %630
        %v632 = vsel %vm616, %v613, inf
        %633 = vmin.xlane.f32.xlu0 %v632
        %v634 = vpop.xlane.xlu0 %633
        %v635 = vsel %vm616, %v614, inf
        %636 = vmin.xlane.f32.xlu0 %v635
        %v637 = vpop.xlane.xlu0 %636
        %v638 = vsel %vm616, %v615, inf
        %639 = vmin.xlane.f32.xlu0 %v638
        %v640 = vpop.xlane.xlu0 %639
        %vm641 = vcmp.gt.f32.partialorder %v589, 0.5
        %v650 = vlaneseq
        %v651 = vand.u32 %v650, 127
        %v652 = vlaneseq
        %v653 = vshrl.u32 %v652, 7
        %v654 = vsub.s32 %v651, %v653
        %v655 = vrot.slane %v619, %v654
        %v656 = vlaneseq
        %v657 = vshrl.u32 %v656, 7
        %v658 = vsub.s32 %v651, %v657
        %v659 = vrot.slane %v622, %v658
        %v660 = vlaneseq
        %v661 = vshrl.u32 %v660, 7
        %v662 = vsub.s32 %v651, %v661
        %v663 = vrot.slane %v625, %v662
        %v664 = vlaneseq
        %v665 = vshrl.u32 %v664, 7
        %v666 = vsub.s32 %v651, %v665
        %v667 = vrot.slane %v628, %v666
        %v668 = vlaneseq
        %v669 = vshrl.u32 %v668, 7
        %v670 = vsub.s32 %v651, %v669
        %v671 = vrot.slane %v631, %v670
        %v672 = vlaneseq
        %v673 = vshrl.u32 %v672, 7
        %v674 = vsub.s32 %v651, %v673
        %v675 = vrot.slane %v634, %v674
        %v676 = vlaneseq
        %v677 = vshrl.u32 %v676, 7
        %v678 = vsub.s32 %v651, %v677
        %v679 = vrot.slane %v637, %v678
        %v680 = vlaneseq
        %v681 = vshrl.u32 %v680, 7
        %v682 = vsub.s32 %v651, %v681
        %v683 = vrot.slane %v640, %v682
        %vm684 = vcmask 1041409
        %v685 = vsel %vm684, %v659, %v655
        %vm686 = vcmask 1042434
        %v687 = vsel %vm686, %v663, %v685
        %vm688 = vcmask 1043459
        %v689 = vsel %vm688, %v667, %v687
        %vm690 = vcmask 1044484
        %v691 = vsel %vm690, %v671, %v689
        %vm692 = vcmask 1045509
        %v693 = vsel %vm692, %v675, %v691
        %vm694 = vcmask 1046534
        %v695 = vsel %vm694, %v679, %v693
        %vm696 = vcmask 1047559
        %v697 = vsel %vm696, %v683, %v695
        %v699 = vadd.s32 %v651, 4
        %v700 = vlaneseq
        %v701 = vshrl.u32 %v700, 7
        %v702 = vsub.s32 %v699, %v701
        %v703 = vrot.slane %v619, %v702
        %v704 = vlaneseq
        %v705 = vshrl.u32 %v704, 7
        %v706 = vsub.s32 %v699, %v705
        %v707 = vrot.slane %v622, %v706
        %v708 = vlaneseq
        %v709 = vshrl.u32 %v708, 7
        %v710 = vsub.s32 %v699, %v709
        %v711 = vrot.slane %v625, %v710
        %v712 = vlaneseq
        %v713 = vshrl.u32 %v712, 7
        %v714 = vsub.s32 %v699, %v713
        %v715 = vrot.slane %v628, %v714
        %v716 = vlaneseq
        %v717 = vshrl.u32 %v716, 7
        %v718 = vsub.s32 %v699, %v717
        %v719 = vrot.slane %v631, %v718
        %v720 = vlaneseq
        %v721 = vshrl.u32 %v720, 7
        %v722 = vsub.s32 %v699, %v721
        %v723 = vrot.slane %v634, %v722
        %v724 = vlaneseq
        %v725 = vshrl.u32 %v724, 7
        %v726 = vsub.s32 %v699, %v725
        %v727 = vrot.slane %v637, %v726
        %v728 = vlaneseq
        %v729 = vshrl.u32 %v728, 7
        %v730 = vsub.s32 %v699, %v729
        %v731 = vrot.slane %v640, %v730
        %v732 = vsel %vm684, %v707, %v703
        %v733 = vsel %vm686, %v711, %v732
        %v734 = vsel %vm688, %v715, %v733
        %v735 = vsel %vm690, %v719, %v734
        %v736 = vsel %vm692, %v723, %v735
        %v737 = vsel %vm694, %v727, %v736
        %v738 = vsel %vm696, %v731, %v737
        %v740 = vsel %vm641, %v697, %v738
        %v741 = vsel %vm641, %v738, %v697
        %v742 = vsel %vm602, %v740, 0.0
        %v743 = vsel %vm602, %v741, 0.0
        %v744 = vld [vmem:[#allocation3] sm:$0xff]
        %v745 = vadd.f32 %v744, %v742
        %746 = vst.msk [vmem:[#allocation3] sm:$0xff] %vm606, %v745
        %v747 = vld [vmem:[#allocation4] sm:$0xff]
        %v748 = vadd.f32 %v747, %v743
        %749 = vst.msk [vmem:[#allocation4] sm:$0xff] %vm606, %v748
        %v750 = vld [vmem:[%s544] sm:$0xff]
        %v751 = vld [vmem:[%s556] sm:$0xff]
        %vm752 = vcmask 39936
        %v753 = vsel %vm752, %v750, -inf
        %754 = vmax.xlane.f32.xlu0 %v753
        %v755 = vpop.xlane.xlu0 %754
        %v756 = vsub.f32 %v750, %v755
        %v757 = vmul.f32 %v756, 1.442695
        %v758 = vpow.pop %v757
        %v759 = vsel %vm752, %v758, 0.0
        %760 = vadd.xlane.f32.xlu0 %v759
        %v761 = vpop.xlane.xlu0 %760
        %v762 = vlog2.pop %v761
        %v763 = vmul.f32 %v762, 0.6931472
        %v764 = vadd.f32 %v763, %v755
        %765 = vset.pattern.permute.xlu0 0
        %766 = vperm.xlu0 %765, %v751
        %v767 = vpop.permute.xlu0 %766
        %vm768 = vcmp.eq.s32.totalorder %v651, %v767
        %v769 = vsel %vm768, %v750, 0.0
        %v770 = vsel %vm752, %v769, 0.0
        %771 = vadd.xlane.f32.xlu0 %v770
        %v772 = vpop.xlane.xlu0 %771
        %v773 = vsub.f32 %v764, %v772
        %v774 = vsel %vm587, %v773, 0.0
        %v775 = vld [vmem:[#allocation5] sm:$0xff]
        %v776 = vadd.f32 %v775, %v774
        %vm777 = vcmask 7168
        %778 = vst.msk [vmem:[#allocation5] sm:$0xff] %vm777, %v776
        %p779 = scmp.eq.s32.totalorder %s28, 1
        // Predicated region
        $region45: #{tpu_custom_call.1} parent=39 // pred_check
          %p780 = pneg %p779
        $region46: #{tpu_custom_call.1} parent=39 // pred_check_branch
          %782 = sbr.rel (%p780) target = $region48
        $region47: #{tpu_custom_call.1} parent=39 // pred_region
          %v783 = vld [vmem:[#allocation2] sm:$0xff]
          %v784 = vsel %vm606, %v783, 0.0
          %v785 = vrot.slane %v784, 4
          %v786 = vadd.f32 %v784, %v785
          %v787 = vrot.slane %v786, 2
          %v788 = vadd.f32 %v786, %v787
          %v789 = vrot.slane %v788, 1
          %v790 = vadd.f32 %v788, %v789
          %vm791 = vcmask 24576
          %792 = vst.msk [vmem:[%s475] sm:$0x1] %vm791, %v790
          %v793 = vld [vmem:[#allocation3] sm:$0xff]
          %v794 = vsel %vm606, %v793, 0.0
          %795 = vadd.xlane.f32.xlu0 %v794
          %v796 = vpop.xlane.xlu0 %795
          %v797 = vrot.slane %v796, 4
          %v798 = vadd.f32 %v796, %v797
          %v799 = vrot.slane %v798, 2
          %v800 = vadd.f32 %v798, %v799
          %v801 = vrot.slane %v800, 1
          %v802 = vadd.f32 %v800, %v801
          %s803 = vtos %v802
          %v804 = vstv %s803
          %vm805 = vcmask 0
          %806 = vst.msk [vmem:[%s563] sm:$0x1] %vm805, %v804
          %v807 = vld [vmem:[#allocation4] sm:$0xff]
          %v808 = vsel %vm606, %v807, 0.0
          %809 = vadd.xlane.f32.xlu0 %v808
          %v810 = vpop.xlane.xlu0 %809
          %v811 = vrot.slane %v810, 4
          %v812 = vadd.f32 %v810, %v811
          %v813 = vrot.slane %v812, 2
          %v814 = vadd.f32 %v812, %v813
          %v815 = vrot.slane %v814, 1
          %v816 = vadd.f32 %v814, %v815
          %s817 = vtos %v816
          %v818 = vstv %s817
          %819 = vst.msk [vmem:[%s566] sm:$0x1] %vm805, %v818
          %v820 = vld [vmem:[#allocation5] sm:$0xff]
          %v821 = vsel %vm777, %v820, 0.0
          %822 = vadd.xlane.f32.xlu0 %v821
          %v823 = vpop.xlane.xlu0 %822
          %v824 = vrot.slane %v823, 4
          %v825 = vadd.f32 %v823, %v824
          %v826 = vrot.slane %v825, 2
          %v827 = vadd.f32 %v825, %v826
          %v828 = vrot.slane %v827, 1
          %v829 = vadd.f32 %v827, %v828
          %s830 = vtos %v829
          %v831 = vstv %s830
          %832 = vst.msk [vmem:[%s569] sm:$0x1] %vm805, %v831
        $region48: #{tpu_custom_call.1} parent=39 // pred_fallthru
          _
        %s833 = sand.u32 %s213, 1
        %s834 = scalar_lea.sflag [#allocation7], %s833
        %s835 = sand.u32 %s213, 1
        %s836 = scalar_lea.vmem [#allocation6], %s835
        %p837 = scmp.lt.s32.totalorder %s27, 1
        %s838 = scalar_select %p837, %s27, 1
        %s839 = scalar_lea.vmem %s6, %s838
        %p840 = scmp.lt.s32.totalorder %s27, 1
        %s841 = scalar_select %p840, %s27, 1
        %s842 = scalar_lea.vmem %s7, %s841
        %p843 = scmp.lt.s32.totalorder %s27, 1
        %s844 = scalar_select %p843, %s27, 1
        %s845 = scalar_lea.vmem %s8, %s844
        // Predicated region
        $region49: #{tpu_custom_call.1} parent=39 // pred_check
          %p846 = pneg %p223
        $region50: #{tpu_custom_call.1} parent=39 // pred_check_branch
          %848 = sbr.rel (%p846) target = $region52
        $region51: #{tpu_custom_call.1} parent=39 // pred_region
          %s850 = ssub.s32 16, 16
          %851 = vsyncadd %s834, %s850
          %s852 = smul.addr %s27, 16
          %s853 = scalar_lea.hbm %s5, %s852
          %s855 = sshll.u32 %s836, 4
          %s856 = int_to_ptr.vmem [resolvable:$true] %s855
          %858 = dma.vmem_to_hbm [thread:$0]  %s856, 16, %s853, %s834
        $region52: #{tpu_custom_call.1} parent=39 // pred_fallthru
          _
        // Predicated region
        $region53: #{tpu_custom_call.1} parent=39 // pred_check
          %p859 = pneg %p249
        $region54: #{tpu_custom_call.1} parent=39 // pred_check_branch
          %861 = sbr.rel (%p859) target = $region56
        $region55: #{tpu_custom_call.1} parent=39 // pred_region
          _
        $region56: #{tpu_custom_call.1} parent=39 // pred_fallthru
          _
        // Predicated region
        $region57: #{tpu_custom_call.1} parent=39 // pred_check
          %p862 = pneg %p275
        $region58: #{tpu_custom_call.1} parent=39 // pred_check_branch
          %864 = sbr.rel (%p862) target = $region60
        $region59: #{tpu_custom_call.1} parent=39 // pred_region
          _
        $region60: #{tpu_custom_call.1} parent=39 // pred_fallthru
          _
        // Predicated region
        $region61: #{tpu_custom_call.1} parent=39 // pred_check
          %p865 = pneg %p301
        $region62: #{tpu_custom_call.1} parent=39 // pred_check_branch
          %867 = sbr.rel (%p865) target = $region64
        $region63: #{tpu_custom_call.1} parent=39 // pred_region
          _
        $region64: #{tpu_custom_call.1} parent=39 // pred_fallthru
          _
      $region40: #{tpu_custom_call.1} parent=5 // pred_fallthru
        _
      %p868 = scmp.le.s32.totalorder 2, %s18
      // Predicated region
      $region65: #{tpu_custom_call.1} parent=5 // pred_check
        %p869 = pneg %p868
      $region66: #{tpu_custom_call.1} parent=5 // pred_check_branch
        %871 = sbr.rel (%p869) target = $region68
      $region67: #{tpu_custom_call.1} parent=5 // pred_region
        %s872 = ssub.s32 %s18, 2
        // Predicated region
        $region69: #{tpu_custom_call.1} parent=67 // pred_check
          %p873 = pneg %p229
        $region70: #{tpu_custom_call.1} parent=67 // pred_check_branch
          %875 = sbr.rel (%p873) target = $region72
        $region71: #{tpu_custom_call.1} parent=67 // pred_region
          %s876 = sand.u32 %s214, 1
          %s877 = scalar_lea.sflag [#allocation7], %s876
          %s878 = sand.u32 %s214, 1
          %s879 = scalar_lea.vmem [#allocation6], %s878
          %880 = dma.done %s877, 16
        $region72: #{tpu_custom_call.1} parent=67 // pred_fallthru
          _
        // Predicated region
        $region73: #{tpu_custom_call.1} parent=67 // pred_check
          %p881 = pneg %p255
        $region74: #{tpu_custom_call.1} parent=67 // pred_check_branch
          %883 = sbr.rel (%p881) target = $region76
        $region75: #{tpu_custom_call.1} parent=67 // pred_region
          %p884 = scmp.lt.s32.totalorder %s29, 1
          %s885 = scalar_select %p884, %s29, 1
          %s886 = scalar_lea.vmem %s6, %s885
        $region76: #{tpu_custom_call.1} parent=67 // pred_fallthru
          _
        // Predicated region
        $region77: #{tpu_custom_call.1} parent=67 // pred_check
          %p887 = pneg %p281
        $region78: #{tpu_custom_call.1} parent=67 // pred_check_branch
          %889 = sbr.rel (%p887) target = $region80
        $region79: #{tpu_custom_call.1} parent=67 // pred_region
          %p890 = scmp.lt.s32.totalorder %s29, 1
          %s891 = scalar_select %p890, %s29, 1
          %s892 = scalar_lea.vmem %s7, %s891
        $region80: #{tpu_custom_call.1} parent=67 // pred_fallthru
          _
        // Predicated region
        $region81: #{tpu_custom_call.1} parent=67 // pred_check
          %p893 = pneg %p307
        $region82: #{tpu_custom_call.1} parent=67 // pred_check_branch
          %895 = sbr.rel (%p893) target = $region84
        $region83: #{tpu_custom_call.1} parent=67 // pred_region
          %p896 = scmp.lt.s32.totalorder %s29, 1
          %s897 = scalar_select %p896, %s29, 1
          %s898 = scalar_lea.vmem %s8, %s897
        $region84: #{tpu_custom_call.1} parent=67 // pred_fallthru
          _
      $region68: #{tpu_custom_call.1} parent=5 // pred_fallthru
        _
    $region6: #{tpu_custom_call.1} parent=1 // loop_footer
      %s22 = sadd.s32 1, %s18
    $region7: #{tpu_custom_call.1} parent=1 // loop_footer_branch
      %17 = sbr.rel target = $region3
    $region8: #{tpu_custom_call.1} parent=1 // loop_exit
      _
    %899 = vsyncpa [#allocation7], 1
    %s900 = scalar_lea.sflag [#allocation7], 1
    %901 = vsyncpa %s900, 1

</llo_original>
